<compile_context>
chip_gen: v7x
topology: tpu7x:2x2x1
jax: 0.10.0
libtpu: 0.0.40
codegen_flags: <defaults>
</compile_context>

<pallas_src>
import functools

import jax
import jax.numpy as jnp
import numpy as np
from jax.experimental import pallas as pl
from jax.experimental.pallas import tpu as pltpu


def _round_up(x: int, m: int) -> int:
    return -(-x // m) * m


# --------------------------------------------------------------------------
# Kernel
# --------------------------------------------------------------------------
def _avg_ensemble_kernel(x1_ref, x2_ref, w1_ref, w2_ref, ba_ref, wb_ref, o_ref):
    """One batch tile of the fused ensemble forward.

    x1_ref : (TB, D1)  model1 inputs, natural layout (batch on sublanes)
    x2_ref : (TB, D2)  model2 inputs, natural layout
    w1_ref : (HP, D1)  fused first-layer weights (model1 member rows, rest 0)
    w2_ref : (HP, D2)  fused first-layer weights (model2 member rows, rest 0)
    ba_ref : (HP, 1)   fused first-layer biases (+ constant-one bias row), f32
    wb_ref : (HP, 1)   head weights pre-scaled by w/n (+ head-bias const), f32
    o_ref  : (1, TB)   lane-dense weighted ensemble average, f32
    """
    w1 = w1_ref[...]
    w2 = w2_ref[...]
    cdt = w1.dtype                                   # f32 or bf16 compute dtype

    # Fused first layer of every member of both models: two MXU pushes with the
    # contraction over each model's feature axis; batch lands on the lane axis.
    # (a @ b.T form — no activation transpose needed anywhere.)
    h = jax.lax.dot_general(
        w1, x1_ref[...].astype(cdt),
        (((1,), (1,)), ((), ())), preferred_element_type=jnp.float32)
    h = h + jax.lax.dot_general(
        w2, x2_ref[...].astype(cdt),
        (((1,), (1,)), ((), ())), preferred_element_type=jnp.float32)

    h = jnp.maximum(h + ba_ref[...], 0.0)            # bias + ReLU on the VPU (f32)

    # Second layer (N=1 heads): VPU multiply + sublane reduction instead of an
    # M=1 MXU matmul.  Ensemble-mean scaling (w/n) and the summed head biases
    # are already folded into wb_ref.
    o_ref[...] = jnp.sum(h * wb_ref[...], axis=0, keepdims=True)   # (1, TB)


# --------------------------------------------------------------------------
# One-time weight fusion (hoisted out of the per-forward path)
# --------------------------------------------------------------------------
def prepare_avg_ensemble(params1, params2, w1=0.5, compute_dtype=jnp.float32):
    """Fold every member's weights once at checkpoint-load time.

    params{k} = dict(Wa=(n,Din,H), ba=(n,1,H), Wb=(n,H,1), bb=(n,1,1)).
    Returns the fused arrays consumed by avg_ensemble_forward.
    """
    f32 = jnp.float32
    n1, D1, H1 = params1["Wa"].shape
    n2, D2, H2 = params2["Wa"].shape
    if n1 == 0 or n2 == 0:
        raise ValueError("Avg_Ensemble needs at least one member per model.")
    w2 = 1.0 - w1
    s1, s2 = float(w1) / n1, float(w2) / n2
    nh1, nh2 = n1 * H1, n2 * H2

    # Only sublane-granule padding (8 for f32, 16 for bf16); +1 = bias row.
    sub = 8 if jnp.dtype(compute_dtype) == jnp.dtype(jnp.float32) else 16
    HP = _round_up(nh1 + nh2 + 1, sub)

    # Row k = i*H + h of model m holds Wa_m[i, :, h]; model1 rows first.
    wa1 = jnp.transpose(params1["Wa"].astype(f32), (0, 2, 1)).reshape(nh1, D1)
    wa2 = jnp.transpose(params2["Wa"].astype(f32), (0, 2, 1)).reshape(nh2, D2)
    W1 = jnp.zeros((HP, D1), f32).at[:nh1].set(wa1).astype(compute_dtype)
    W2 = (jnp.zeros((HP, D2), f32).at[nh1:nh1 + nh2].set(wa2)
          .astype(compute_dtype))

    ba = jnp.zeros((HP, 1), f32)
    ba = ba.at[:nh1, 0].set(params1["ba"].astype(f32).reshape(nh1))
    ba = ba.at[nh1:nh1 + nh2, 0].set(params2["ba"].astype(f32).reshape(nh2))
    ba = ba.at[nh1 + nh2, 0].set(1.0)        # bias row: ReLU(0*x + 1) == 1

    # Head weights pre-scaled by w/n so the sublane sum IS the weighted mean.
    bias_const = (s1 * jnp.sum(params1["bb"].astype(f32))
                  + s2 * jnp.sum(params2["bb"].astype(f32)))
    wb = jnp.zeros((HP, 1), f32)
    wb = wb.at[:nh1, 0].set(params1["Wb"].astype(f32).reshape(nh1) * s1)
    wb = wb.at[nh1:nh1 + nh2, 0].set(params2["Wb"].astype(f32).reshape(nh2) * s2)
    wb = wb.at[nh1 + nh2, 0].set(bias_const)

    return {"W1": W1, "W2": W2, "ba": ba, "wb": wb}


# --------------------------------------------------------------------------
# Batch-tile selection
# --------------------------------------------------------------------------
def _pick_batch_tile(B: int, cap: int = 2048) -> int:
    """Lane-dense batch tile: multiple of 128, large (amortizes the ~0.35us
    per-grid-step overhead), but <= ceil(B/2) rounded to 128 so the 1-D
    "parallel" grid keeps >= 2 steps for v7x's two TensorCores, and the last
    (ragged) tile never wastes more than ~half the batch."""
    if B <= 128:
        return 128
    half = _round_up(-(-B // 2), 128)
    return max(128, min(cap, half))


# --------------------------------------------------------------------------
# Forward
# --------------------------------------------------------------------------
def avg_ensemble_forward(x1, x2, fused, *, batch_tile=None):
    """Returns the (B,) weighted ensemble average, matching Avg_Ensemble.forward."""
    B, D1 = x1.shape
    D2 = x2.shape[1]
    HP = fused["W1"].shape[0]
    TB = int(batch_tile) if batch_tile is not None else _pick_batch_tile(B)
    grid = (pl.cdiv(B, TB),)

    out = pl.pallas_call(
        _avg_ensemble_kernel,
        out_shape=jax.ShapeDtypeStruct((1, B), jnp.float32),
        grid_spec=pltpu.PrefetchScalarGridSpec(
            num_scalar_prefetch=0,
            grid=grid,
            in_specs=[
                pl.BlockSpec((TB, D1), lambda i: (i, 0)),   # x1 tile (natural)
                pl.BlockSpec((TB, D2), lambda i: (i, 0)),   # x2 tile (natural)
                pl.BlockSpec((HP, D1), lambda i: (0, 0)),   # fused W1 (resident)
                pl.BlockSpec((HP, D2), lambda i: (0, 0)),   # fused W2 (resident)
                pl.BlockSpec((HP, 1), lambda i: (0, 0)),    # fused ba
                pl.BlockSpec((HP, 1), lambda i: (0, 0)),    # fused/scaled wb
            ],
            out_specs=pl.BlockSpec((1, TB), lambda i: (0, i)),  # lane-dense out
        ),
        compiler_params=pltpu.CompilerParams(
            dimension_semantics=("parallel",)),
    )(x1, x2, fused["W1"], fused["W2"], fused["ba"], fused["wb"])

    return out[0]                               # (B,), matches torch output shape


# --------------------------------------------------------------------------
# Pure-JAX reference & synthetic members
# --------------------------------------------------------------------------
def _reference(x1, x2, params1, params2, w1):
    """Pure-JAX reference mirroring Ensemble + Avg_Ensemble exactly."""
    def member_scores(x, p):
        scores = []
        for i in range(p["Wa"].shape[0]):
            h = jnp.maximum(x @ p["Wa"][i] + p["ba"][i], 0.0)
            scores.append(h @ p["Wb"][i] + p["bb"][i])        # (B, 1)
        return jnp.concatenate(scores, axis=1)                # (B, n)
    s1 = member_scores(x1, params1)
    s2 = member_scores(x2, params2)
    # torch.concat([...], dim=1) -> split -> mean(dim=1)*w -> add
    return jnp.mean(s1, axis=1) * w1 + jnp.mean(s2, axis=1) * (1.0 - w1)


def _make_params(key, n_members, d_in, hidden):
    k1, k2, k3, k4 = jax.random.split(key, 4)
    return {
        "Wa": (jax.random.normal(k1, (n_members, d_in, hidden), jnp.float32)
               * (1.0 / np.sqrt(d_in))),
        "ba": jax.random.normal(k2, (n_members, 1, hidden), jnp.float32) * 0.1,
        "Wb": (jax.random.normal(k3, (n_members, hidden, 1), jnp.float32)
               * (1.0 / np.sqrt(hidden))),
        "bb": jax.random.normal(k4, (n_members, 1, 1), jnp.float32) * 0.1,
    }


if __name__ == "__main__":
    # TODO(synk): the original module walks a checkpoint directory and
    # torch.load()s per-member weights; here members are synthetic MLPs.
    B, D1, D2, H = 8, 32, 24, 16
    N_MODEL1, N_MODEL2 = 3, 2
    W1 = 0.6

    key = jax.random.PRNGKey(0)
    kx1, kx2, kp1, kp2 = jax.random.split(key, 4)
    x1 = jax.random.normal(kx1, (B, D1), jnp.float32)   # model1_dat
    x2 = jax.random.normal(kx2, (B, D2), jnp.float32)   # model2_dat
    params1 = _make_params(kp1, N_MODEL1, D1, H)
    params2 = _make_params(kp2, N_MODEL2, D2, H)

    fwd = jax.jit(functools.partial(avg_ensemble_forward))

    # --- f32 path: tight parity with the torch-equivalent reference ---------
    fused_f32 = prepare_avg_ensemble(params1, params2, w1=W1,
                                     compute_dtype=jnp.float32)
    out = jax.block_until_ready(fwd(x1, x2, fused_f32))
    ref = _reference(x1, x2, params1, params2, W1)
    np.testing.assert_allclose(np.asarray(out), np.asarray(ref),
                               rtol=1e-5, atol=1e-5)

    # --- multi-tile path with a ragged batch tail (grid=2, last block OOB) --
    B2 = 300
    kz1, kz2 = jax.random.split(jax.random.PRNGKey(1), 2)
    y1 = jax.random.normal(kz1, (B2, D1), jnp.float32)
    y2 = jax.random.normal(kz2, (B2, D2), jnp.float32)
    out2 = jax.block_until_ready(fwd(y1, y2, fused_f32))
    ref2 = _reference(y1, y2, params1, params2, W1)
    np.testing.assert_allclose(np.asarray(out2), np.asarray(ref2),
                               rtol=1e-5, atol=1e-5)

    # --- bf16 MXU path (production-speed option; looser tolerance by design) -
    fused_bf16 = prepare_avg_ensemble(params1, params2, w1=W1,
                                      compute_dtype=jnp.bfloat16)
    out3 = jax.block_until_ready(fwd(x1, x2, fused_bf16))
    np.testing.assert_allclose(np.asarray(out3), np.asarray(ref),
                               rtol=5e-2, atol=5e-2)

    print("KERNEL_OK")
</pallas_src>

<mosaic_0001>
module attributes {stable_mosaic.version = 11 : i64} {
  func.func @_avg_ensemble_kernel(%arg0: i32, %arg1: memref<128x32xf32, #tpu.memory_space<vmem>>, %arg2: memref<128x24xf32, #tpu.memory_space<vmem>>, %arg3: memref<88x32xf32, #tpu.memory_space<vmem>>, %arg4: memref<88x24xf32, #tpu.memory_space<vmem>>, %arg5: memref<88x1xf32, #tpu.memory_space<vmem>>, %arg6: memref<88x1xf32, #tpu.memory_space<vmem>>, %arg7: memref<1x128xf32, #tpu.memory_space<vmem>>) attributes {dimension_semantics = [#tpu.dimension_semantics<parallel>], iteration_bounds = array<i64: 1>, scalar_prefetch = 0 : i64, scratch_operands = 0 : i64, tpu.core_type = #tpu.core_type<tc>, window_params = [{transform_indices = @transform_0, window_bounds = array<i64: 128, 32>}, {transform_indices = @transform_1, window_bounds = array<i64: 128, 24>}, {pipeline_mode = #tpu.pipeline_mode<synchronous>, transform_indices = @transform_2, window_bounds = array<i64: 88, 32>}, {pipeline_mode = #tpu.pipeline_mode<synchronous>, transform_indices = @transform_3, window_bounds = array<i64: 88, 24>}, {pipeline_mode = #tpu.pipeline_mode<synchronous>, transform_indices = @transform_4, window_bounds = array<i64: 88, 1>}, {pipeline_mode = #tpu.pipeline_mode<synchronous>, transform_indices = @transform_5, window_bounds = array<i64: 88, 1>}, {transform_indices = @transform_6, window_bounds = array<i64: 1, 128>}]} {
    %c0 = arith.constant 0 : index
    %c0_0 = arith.constant 0 : index
    %0 = vector.load %arg3[%c0, %c0_0] : memref<88x32xf32, #tpu.memory_space<vmem>>, vector<88x32xf32>
    %c0_1 = arith.constant 0 : index
    %c0_2 = arith.constant 0 : index
    %1 = vector.load %arg4[%c0_1, %c0_2] : memref<88x24xf32, #tpu.memory_space<vmem>>, vector<88x24xf32>
    %c0_3 = arith.constant 0 : index
    %c0_4 = arith.constant 0 : index
    %2 = vector.load %arg1[%c0_3, %c0_4] : memref<128x32xf32, #tpu.memory_space<vmem>>, vector<128x32xf32>
    %cst = arith.constant dense<0.000000e+00> : vector<88x128xf32>
    %3 = tpu.matmul %0, %2, %cst {dimension_numbers = #tpu.dot_dimension_numbers<[1], [1], [0], [0], [0, 0, 1, 0], [], []>} : vector<88x32xf32>, vector<128x32xf32>, vector<88x128xf32> -> vector<88x128xf32>
    %c0_5 = arith.constant 0 : index
    %c0_6 = arith.constant 0 : index
    %4 = vector.load %arg2[%c0_5, %c0_6] : memref<128x24xf32, #tpu.memory_space<vmem>>, vector<128x24xf32>
    %cst_7 = arith.constant dense<0.000000e+00> : vector<88x128xf32>
    %5 = tpu.matmul %1, %4, %cst_7 {dimension_numbers = #tpu.dot_dimension_numbers<[1], [1], [0], [0], [0, 0, 1, 0], [], []>} : vector<88x24xf32>, vector<128x24xf32>, vector<88x128xf32> -> vector<88x128xf32>
    %6 = arith.addf %3, %5 : vector<88x128xf32>
    %c0_8 = arith.constant 0 : index
    %c0_9 = arith.constant 0 : index
    %7 = vector.load %arg5[%c0_8, %c0_9] : memref<88x1xf32, #tpu.memory_space<vmem>>, vector<88x1xf32>
    %8 = vector.broadcast %7 : vector<88x1xf32> to vector<88x128xf32>
    %9 = arith.addf %6, %8 : vector<88x128xf32>
    %cst_10 = arith.constant 0.000000e+00 : f32
    %10 = vector.broadcast %cst_10 : f32 to vector<88x128xf32>
    %11 = arith.maximumf %9, %10 : vector<88x128xf32>
    %c0_11 = arith.constant 0 : index
    %c0_12 = arith.constant 0 : index
    %12 = vector.load %arg6[%c0_11, %c0_12] : memref<88x1xf32, #tpu.memory_space<vmem>>, vector<88x1xf32>
    %13 = vector.broadcast %12 : vector<88x1xf32> to vector<88x128xf32>
    %14 = arith.mulf %11, %13 : vector<88x128xf32>
    %cst_13 = arith.constant dense<0.000000e+00> : vector<128xf32>
    %15 = vector.multi_reduction <add>, %14, %cst_13 [0] : vector<88x128xf32> to vector<128xf32>
    %16 = vector.shape_cast %15 : vector<128xf32> to vector<1x128xf32>
    %c0_14 = arith.constant 0 : index
    %c0_15 = arith.constant 0 : index
    %17 = vector.load %arg7[%c0_14, %c0_15] : memref<1x128xf32, #tpu.memory_space<vmem>>, vector<1x128xf32>
    tpu.vector_store %arg7[%c0_14, %c0_15], %16 {strides = array<i32>} : memref<1x128xf32, #tpu.memory_space<vmem>>, vector<1x128xf32>,
    return
  }
  func.func @transform_0(%arg0: i32) -> (i32, i32) {
    %c0_i32 = arith.constant 0 : i32
    %c0_i32_0 = arith.constant 0 : i32
    return %arg0, %c0_i32 : i32, i32
  }
  func.func @transform_1(%arg0: i32) -> (i32, i32) {
    %c0_i32 = arith.constant 0 : i32
    %c0_i32_0 = arith.constant 0 : i32
    return %arg0, %c0_i32 : i32, i32
  }
  func.func @transform_2(%arg0: i32) -> (i32, i32) {
    %c0_i32 = arith.constant 0 : i32
    %c0_i32_0 = arith.constant 0 : i32
    %c0_i32_1 = arith.constant 0 : i32
    return %c0_i32, %c0_i32_0 : i32, i32
  }
  func.func @transform_3(%arg0: i32) -> (i32, i32) {
    %c0_i32 = arith.constant 0 : i32
    %c0_i32_0 = arith.constant 0 : i32
    %c0_i32_1 = arith.constant 0 : i32
    return %c0_i32, %c0_i32_0 : i32, i32
  }
  func.func @transform_4(%arg0: i32) -> (i32, i32) {
    %c0_i32 = arith.constant 0 : i32
    %c0_i32_0 = arith.constant 0 : i32
    %c0_i32_1 = arith.constant 0 : i32
    return %c0_i32, %c0_i32_0 : i32, i32
  }
  func.func @transform_5(%arg0: i32) -> (i32, i32) {
    %c0_i32 = arith.constant 0 : i32
    %c0_i32_0 = arith.constant 0 : i32
    %c0_i32_1 = arith.constant 0 : i32
    return %c0_i32, %c0_i32_0 : i32, i32
  }
  func.func @transform_6(%arg0: i32) -> (i32, i32) {
    %c0_i32 = arith.constant 0 : i32
    %c0_i32_0 = arith.constant 0 : i32
    return %c0_i32, %arg0 : i32, i32
  }
}

</mosaic_0001>

<llo_original>
// kernel: avg_ensemble_forward.1
$region0: #{avg_ensemble_forward.1}
  #allocation0 [shape = 'u32[]', space=smem, size = 0x4, offset = 0x4, fixed_abs, tag = 'smem constant byte address 0x4 - core index']
  #allocation1 [shape = 'u32[144,128]{1,0:T(1,128)}', space=vmem, size = 0x12000, scoped, tag = 'internal scratch']
  %s0 = inlined_call_operand.vmem [shape: f32[8,32], index: 0, kind: input, shape index: {}]
  %s1 = inlined_call_operand.vmem [shape: f32[8,24], index: 1, kind: input, shape index: {}]
  %s2 = inlined_call_operand.vmem [shape: f32[88,32], index: 2, kind: input, shape index: {}]
  %s3 = inlined_call_operand.vmem [shape: f32[88,24], index: 3, kind: input, shape index: {}]
  %s4 = inlined_call_operand.vmem [shape: f32[88,1], index: 4, kind: input, shape index: {}]
  %s5 = inlined_call_operand.vmem [shape: f32[88,1], index: 5, kind: input, shape index: {}]
  %s6 = inlined_call_operand.hbm [shape: f32[1,8], index: 6, kind: output, shape index: {}]
  %s7 = sld [smem:[#allocation0]]
  $region34: #{avg_ensemble_forward.1} parent=0
    _
  %s9 = ssub.s32 1, %s7
  %s10 = scalar_select 0, %s9, %s7
  $region1: #{avg_ensemble_forward.1} parent=0
    #allocation2 [shape = 'u8[512]{0}', space=vmem, size = 0x400, scoped, tag = 'output window, operand 0, single buffered']
    #allocation3 [shape = 's32[1]{0}', space=sflag, size = 0x4, scoped, tag = 'scoped memory for avg_ensemble_forward.1']
    %11 = vsyncpa [#allocation3], 0
    // Predicated region
    $region2: #{avg_ensemble_forward.1} parent=1 // pred_check
      _
    $region3: #{avg_ensemble_forward.1} parent=1 // pred_check_branch
      %13 = sbr.rel (0) target = $region5
    $region4: #{avg_ensemble_forward.1} parent=1 // pred_region
      _
    $region5: #{avg_ensemble_forward.1} parent=1 // pred_fallthru
      _
    // Predicated region
    $region6: #{avg_ensemble_forward.1} parent=1 // pred_check
      _
    $region7: #{avg_ensemble_forward.1} parent=1 // pred_check_branch
      %15 = sbr.rel (0) target = $region9
    $region8: #{avg_ensemble_forward.1} parent=1 // pred_region
      _
    $region9: #{avg_ensemble_forward.1} parent=1 // pred_fallthru
      _
    // Predicated region
    $region10: #{avg_ensemble_forward.1} parent=1 // pred_check
      _
    $region11: #{avg_ensemble_forward.1} parent=1 // pred_check_branch
      %17 = sbr.rel (0) target = $region13
    $region12: #{avg_ensemble_forward.1} parent=1 // pred_region
      _
    $region13: #{avg_ensemble_forward.1} parent=1 // pred_fallthru
      _
    // Predicated region
    $region14: #{avg_ensemble_forward.1} parent=1 // pred_check
      _
    $region15: #{avg_ensemble_forward.1} parent=1 // pred_check_branch
      %19 = sbr.rel (0) target = $region17
    $region16: #{avg_ensemble_forward.1} parent=1 // pred_region
      _
    $region17: #{avg_ensemble_forward.1} parent=1 // pred_fallthru
      _
    // Predicated region
    $region18: #{avg_ensemble_forward.1} parent=1 // pred_check
      _
    $region19: #{avg_ensemble_forward.1} parent=1 // pred_check_branch
      %21 = sbr.rel (0) target = $region21
    $region20: #{avg_ensemble_forward.1} parent=1 // pred_region
      _
    $region21: #{avg_ensemble_forward.1} parent=1 // pred_fallthru
      _
    // Predicated region
    $region22: #{avg_ensemble_forward.1} parent=1 // pred_check
      _
    $region23: #{avg_ensemble_forward.1} parent=1 // pred_check_branch
      %23 = sbr.rel (0) target = $region25
    $region24: #{avg_ensemble_forward.1} parent=1 // pred_region
      _
    $region25: #{avg_ensemble_forward.1} parent=1 // pred_fallthru
      _
    %v24 = vld [vmem:[%s2] sm:$0xff]
    %v25 = vld [vmem:[%s2 + $0x8] sm:$0xff]
    %v26 = vld [vmem:[%s2 + $0x10] sm:$0xff]
    %v27 = vld [vmem:[%s2 + $0x18] sm:$0xff]
    %v28 = vld [vmem:[%s2 + $0x20] sm:$0xff]
    %v29 = vld [vmem:[%s2 + $0x28] sm:$0xff]
    %v30 = vld [vmem:[%s2 + $0x30] sm:$0xff]
    %v31 = vld [vmem:[%s2 + $0x38] sm:$0xff]
    %v32 = vld [vmem:[%s2 + $0x40] sm:$0xff]
    %v33 = vld [vmem:[%s2 + $0x48] sm:$0xff]
    %v34 = vld [vmem:[%s2 + $0x50] sm:$0xff]
    %v35 = vld [vmem:[%s3] sm:$0xff]
    %v36 = vld [vmem:[%s3 + $0x8] sm:$0xff]
    %v37 = vld [vmem:[%s3 + $0x10] sm:$0xff]
    %v38 = vld [vmem:[%s3 + $0x18] sm:$0xff]
    %v39 = vld [vmem:[%s3 + $0x20] sm:$0xff]
    %v40 = vld [vmem:[%s3 + $0x28] sm:$0xff]
    %v41 = vld [vmem:[%s3 + $0x30] sm:$0xff]
    %v42 = vld [vmem:[%s3 + $0x38] sm:$0xff]
    %v43 = vld [vmem:[%s3 + $0x40] sm:$0xff]
    %v44 = vld [vmem:[%s3 + $0x48] sm:$0xff]
    %v45 = vld [vmem:[%s3 + $0x50] sm:$0xff]
    %v46 = vld [vmem:[%s0] sm:$0xff]
    %v47 = vld [vmem:[%s0 + $0x8] sm:$0xff]
    %v48 = vld [vmem:[%s0 + $0x10] sm:$0xff]
    %v49 = vld [vmem:[%s0 + $0x18] sm:$0xff]
    %v50 = vld [vmem:[%s0 + $0x20] sm:$0xff]
    %v51 = vld [vmem:[%s0 + $0x28] sm:$0xff]
    %v52 = vld [vmem:[%s0 + $0x30] sm:$0xff]
    %v53 = vld [vmem:[%s0 + $0x38] sm:$0xff]
    %v54 = vld [vmem:[%s0 + $0x40] sm:$0xff]
    %v55 = vld [vmem:[%s0 + $0x48] sm:$0xff]
    %v56 = vld [vmem:[%s0 + $0x50] sm:$0xff]
    %v57 = vld [vmem:[%s0 + $0x58] sm:$0xff]
    %v58 = vld [vmem:[%s0 + $0x60] sm:$0xff]
    %v59 = vld [vmem:[%s0 + $0x68] sm:$0xff]
    %v60 = vld [vmem:[%s0 + $0x70] sm:$0xff]
    %v61 = vld [vmem:[%s0 + $0x78] sm:$0xff]
    %v62 = vld [vmem:[%s1] sm:$0xff]
    %v63 = vld [vmem:[%s1 + $0x8] sm:$0xff]
    %v64 = vld [vmem:[%s1 + $0x10] sm:$0xff]
    %v65 = vld [vmem:[%s1 + $0x18] sm:$0xff]
    %v66 = vld [vmem:[%s1 + $0x20] sm:$0xff]
    %v67 = vld [vmem:[%s1 + $0x28] sm:$0xff]
    %v68 = vld [vmem:[%s1 + $0x30] sm:$0xff]
    %v69 = vld [vmem:[%s1 + $0x38] sm:$0xff]
    %v70 = vld [vmem:[%s1 + $0x40] sm:$0xff]
    %v71 = vld [vmem:[%s1 + $0x48] sm:$0xff]
    %v72 = vld [vmem:[%s1 + $0x50] sm:$0xff]
    %v73 = vld [vmem:[%s1 + $0x58] sm:$0xff]
    %v74 = vld [vmem:[%s1 + $0x60] sm:$0xff]
    %v75 = vld [vmem:[%s1 + $0x68] sm:$0xff]
    %v76 = vld [vmem:[%s1 + $0x70] sm:$0xff]
    %v77 = vld [vmem:[%s1 + $0x78] sm:$0xff]
    %vm78 = vcmask 195584
    %v80 = vsel %vm78, %v35, 0
    %v83 = vsel %vm78, %v36, 0
    %v86 = vsel %vm78, %v37, 0
    %v89 = vsel %vm78, %v38, 0
    %v92 = vsel %vm78, %v39, 0
    %v95 = vsel %vm78, %v40, 0
    %v98 = vsel %vm78, %v41, 0
    %v101 = vsel %vm78, %v42, 0
    %v104 = vsel %vm78, %v43, 0
    %v107 = vsel %vm78, %v44, 0
    %v110 = vsel %vm78, %v45, 0
    %v113 = vsel %vm78, %v62, 0
    %v116 = vsel %vm78, %v63, 0
    %v119 = vsel %vm78, %v64, 0
    %v122 = vsel %vm78, %v65, 0
    %v125 = vsel %vm78, %v66, 0
    %v128 = vsel %vm78, %v67, 0
    %v131 = vsel %vm78, %v68, 0
    %v134 = vsel %vm78, %v69, 0
    %v137 = vsel %vm78, %v70, 0
    %v140 = vsel %vm78, %v71, 0
    %v143 = vsel %vm78, %v72, 0
    %v146 = vsel %vm78, %v73, 0
    %v149 = vsel %vm78, %v74, 0
    %v152 = vsel %vm78, %v75, 0
    %v155 = vsel %vm78, %v76, 0
    %v158 = vsel %vm78, %v77, 0
    %160 = vmatprep.subr.mxu0 0.0
    %161 = vmatpush1.xpose.msra.mxu0 %v113
    %162 = vmatprep.subr.mxu0 0.0
    %163 = vmatpush1.xpose.msra.mxu0 %v116
    %164 = vmatprep.subr.mxu0 0.0
    %165 = vmatpush1.xpose.msra.mxu0 %v119
    %166 = vmatprep.subr.mxu0 0.0
    %167 = vmatpush1.xpose.msra.mxu0 %v122
    %168 = vmatprep.subr.mxu0 0.0
    %169 = vmatpush1.xpose.msra.mxu0 %v125
    %170 = vmatprep.subr.mxu0 0.0
    %171 = vmatpush1.xpose.msra.mxu0 %v128
    %172 = vmatprep.subr.mxu0 0.0
    %173 = vmatpush1.xpose.msra.mxu0 %v131
    %174 = vmatprep.subr.mxu0 0.0
    %175 = vmatpush1.xpose.msra.mxu0 %v134
    %176 = vmatprep.subr.mxu0 0.0
    %177 = vmatpush1.xpose.msra.mxu0 %v137
    %178 = vmatprep.subr.mxu0 0.0
    %179 = vmatpush1.xpose.msra.mxu0 %v140
    %180 = vmatprep.subr.mxu0 0.0
    %181 = vmatpush1.xpose.msra.mxu0 %v143
    %182 = vmatprep.subr.mxu0 0.0
    %183 = vmatpush1.xpose.msra.mxu0 %v146
    %184 = vmatprep.subr.mxu0 0.0
    %185 = vmatpush1.xpose.msra.mxu0 %v149
    %186 = vmatprep.subr.mxu0 0.0
    %187 = vmatpush1.xpose.msra.mxu0 %v152
    %188 = vmatprep.subr.mxu0 0.0
    %189 = vmatpush1.xpose.msra.mxu0 %v155
    %190 = vmatprep.subr.mxu0 0.0
    %191 = vmatpush1.xpose.msra.mxu0 %v158
    %192 = vmatprep.subr.mxu0 0.0
    %193 = vmatpush1.xpose.msra.mxu0 0.0
    %194 = vmatprep.subr.mxu0 0.0
    %195 = vmatpush1.xpose.msra.mxu0 0.0
    %196 = vmatprep.subr.mxu0 0.0
    %197 = vmatpush1.xpose.msra.mxu0 0.0
    %198 = vmatprep.subr.mxu0 0.0
    %199 = vmatpush1.xpose.msra.mxu0 0.0
    %200 = vmatprep.subr.mxu0 0.0
    %201 = vmatpush1.xpose.msra.mxu0 0.0
    %202 = vmatprep.subr.mxu0 0.0
    %203 = vmatpush1.xpose.msra.mxu0 0.0
    %204 = vmatprep.subr.mxu0 0.0
    %205 = vmatpush1.xpose.msra.mxu0 0.0
    %206 = vmatprep.subr.mxu0 0.0
    %207 = vmatpush1.xpose.msra.mxu0 0.0
    %208 = vmatprep.subr.mxu0 0.0
    %209 = vmatpush1.xpose.msra.mxu0 0.0
    %210 = vmatprep.subr.mxu0 0.0
    %211 = vmatpush1.xpose.msra.mxu0 0.0
    %212 = vmatprep.subr.mxu0 0.0
    %213 = vmatpush1.xpose.msra.mxu0 0.0
    %214 = vmatprep.subr.mxu0 0.0
    %215 = vmatpush1.xpose.msra.mxu0 0.0
    %216 = vmatprep.subr.mxu0 0.0
    %217 = vmatpush1.xpose.msra.mxu0 0.0
    %218 = vmatprep.subr.mxu0 0.0
    %219 = vmatpush1.xpose.msra.mxu0 0.0
    %220 = vmatprep.subr.mxu0 0.0
    %221 = vmatpush1.xpose.msra.mxu0 0.0
    %222 = vmatprep.subr.mxu0 0.0
    %223 = vmatpush1.xpose.msra.mxu0 0.0
    %224 = vmatprep.mubr.f32.mxu0 0.0
    %225 = vmatmul.mubr.f32.gmra.mrb[0].mxu0 %v80
    %v226 = vpop.f32.mrb[0].mxu0
    %v227 = vadd.f32 0.0, %v226
    %v228 = vpop.f32.mrb[0].mxu0
    %229 = vmatprep.mubr.f32.mxu0 0.0
    %230 = vmatmul.mubr.f32.gmra.mrb[0].mxu0 %v83
    %v231 = vpop.f32.mrb[0].mxu0
    %v232 = vadd.f32 0.0, %v231
    %v233 = vpop.f32.mrb[0].mxu0
    %234 = vmatprep.mubr.f32.mxu0 0.0
    %235 = vmatmul.mubr.f32.gmra.mrb[0].mxu0 %v86
    %v236 = vpop.f32.mrb[0].mxu0
    %v237 = vadd.f32 0.0, %v236
    %v238 = vpop.f32.mrb[0].mxu0
    %239 = vmatprep.mubr.f32.mxu0 0.0
    %240 = vmatmul.mubr.f32.gmra.mrb[0].mxu0 %v89
    %v241 = vpop.f32.mrb[0].mxu0
    %v242 = vadd.f32 0.0, %v241
    %v243 = vpop.f32.mrb[0].mxu0
    %244 = vmatprep.mubr.f32.mxu0 0.0
    %245 = vmatmul.mubr.f32.gmra.mrb[0].mxu0 %v92
    %v246 = vpop.f32.mrb[0].mxu0
    %v247 = vadd.f32 0.0, %v246
    %v248 = vpop.f32.mrb[0].mxu0
    %249 = vmatprep.mubr.f32.mxu0 0.0
    %250 = vmatmul.mubr.f32.gmra.mrb[0].mxu0 %v95
    %v251 = vpop.f32.mrb[0].mxu0
    %v252 = vadd.f32 0.0, %v251
    %v253 = vpop.f32.mrb[0].mxu0
    %254 = vmatprep.mubr.f32.mxu0 0.0
    %255 = vmatmul.mubr.f32.gmra.mrb[0].mxu0 %v98
    %v256 = vpop.f32.mrb[0].mxu0
    %v257 = vadd.f32 0.0, %v256
    %v258 = vpop.f32.mrb[0].mxu0
    %259 = vmatprep.mubr.f32.mxu0 0.0
    %260 = vmatmul.mubr.f32.gmra.mrb[0].mxu0 %v101
    %v261 = vpop.f32.mrb[0].mxu0
    %v262 = vadd.f32 0.0, %v261
    %v263 = vpop.f32.mrb[0].mxu0
    %264 = vmatprep.mubr.f32.mxu0 0.0
    %265 = vmatmul.mubr.f32.gmra.mrb[0].mxu0 %v104
    %v266 = vpop.f32.mrb[0].mxu0
    %v267 = vadd.f32 0.0, %v266
    %v268 = vpop.f32.mrb[0].mxu0
    %269 = vmatprep.mubr.f32.mxu0 0.0
    %270 = vmatmul.mubr.f32.gmra.mrb[0].mxu0 %v107
    %v271 = vpop.f32.mrb[0].mxu0
    %v272 = vadd.f32 0.0, %v271
    %v273 = vpop.f32.mrb[0].mxu0
    %274 = vmatprep.mubr.f32.mxu0 0.0
    %275 = vmatmul.mubr.f32.gmra.mrb[0].mxu0 %v110
    %v276 = vpop.f32.mrb[0].mxu0
    %v277 = vadd.f32 0.0, %v276
    %v278 = vpop.f32.mrb[0].mxu0
    %279 = vdwg.mxu0
    %vm280 = vcmask 261120
    %v282 = vsel %vm280, %v24, 0
    %v285 = vsel %vm280, %v25, 0
    %v288 = vsel %vm280, %v26, 0
    %v291 = vsel %vm280, %v27, 0
    %v294 = vsel %vm280, %v28, 0
    %v297 = vsel %vm280, %v29, 0
    %v300 = vsel %vm280, %v30, 0
    %v303 = vsel %vm280, %v31, 0
    %v306 = vsel %vm280, %v32, 0
    %v309 = vsel %vm280, %v33, 0
    %v312 = vsel %vm280, %v34, 0
    %v315 = vsel %vm280, %v46, 0
    %v318 = vsel %vm280, %v47, 0
    %v321 = vsel %vm280, %v48, 0
    %v324 = vsel %vm280, %v49, 0
    %v327 = vsel %vm280, %v50, 0
    %v330 = vsel %vm280, %v51, 0
    %v333 = vsel %vm280, %v52, 0
    %v336 = vsel %vm280, %v53, 0
    %v339 = vsel %vm280, %v54, 0
    %v342 = vsel %vm280, %v55, 0
    %v345 = vsel %vm280, %v56, 0
    %v348 = vsel %vm280, %v57, 0
    %v351 = vsel %vm280, %v58, 0
    %v354 = vsel %vm280, %v59, 0
    %v357 = vsel %vm280, %v60, 0
    %v360 = vsel %vm280, %v61, 0
    %362 = vmatprep.subr.mxu0 0.0
    %363 = vmatpush1.xpose.msra.mxu0 %v315
    %364 = vmatprep.subr.mxu0 0.0
    %365 = vmatpush1.xpose.msra.mxu0 %v318
    %366 = vmatprep.subr.mxu0 0.0
    %367 = vmatpush1.xpose.msra.mxu0 %v321
    %368 = vmatprep.subr.mxu0 0.0
    %369 = vmatpush1.xpose.msra.mxu0 %v324
    %370 = vmatprep.subr.mxu0 0.0
    %371 = vmatpush1.xpose.msra.mxu0 %v327
    %372 = vmatprep.subr.mxu0 0.0
    %373 = vmatpush1.xpose.msra.mxu0 %v330
    %374 = vmatprep.subr.mxu0 0.0
    %375 = vmatpush1.xpose.msra.mxu0 %v333
    %376 = vmatprep.subr.mxu0 0.0
    %377 = vmatpush1.xpose.msra.mxu0 %v336
    %378 = vmatprep.subr.mxu0 0.0
    %379 = vmatpush1.xpose.msra.mxu0 %v339
    %380 = vmatprep.subr.mxu0 0.0
    %381 = vmatpush1.xpose.msra.mxu0 %v342
    %382 = vmatprep.subr.mxu0 0.0
    %383 = vmatpush1.xpose.msra.mxu0 %v345
    %384 = vmatprep.subr.mxu0 0.0
    %385 = vmatpush1.xpose.msra.mxu0 %v348
    %386 = vmatprep.subr.mxu0 0.0
    %387 = vmatpush1.xpose.msra.mxu0 %v351
    %388 = vmatprep.subr.mxu0 0.0
    %389 = vmatpush1.xpose.msra.mxu0 %v354
    %390 = vmatprep.subr.mxu0 0.0
    %391 = vmatpush1.xpose.msra.mxu0 %v357
    %392 = vmatprep.subr.mxu0 0.0
    %393 = vmatpush1.xpose.msra.mxu0 %v360
    %394 = vmatprep.subr.mxu0 0.0
    %395 = vmatpush1.xpose.msra.mxu0 0.0
    %396 = vmatprep.subr.mxu0 0.0
    %397 = vmatpush1.xpose.msra.mxu0 0.0
    %398 = vmatprep.subr.mxu0 0.0
    %399 = vmatpush1.xpose.msra.mxu0 0.0
    %400 = vmatprep.subr.mxu0 0.0
    %401 = vmatpush1.xpose.msra.mxu0 0.0
    %402 = vmatprep.subr.mxu0 0.0
    %403 = vmatpush1.xpose.msra.mxu0 0.0
    %404 = vmatprep.subr.mxu0 0.0
    %405 = vmatpush1.xpose.msra.mxu0 0.0
    %406 = vmatprep.subr.mxu0 0.0
    %407 = vmatpush1.xpose.msra.mxu0 0.0
    %408 = vmatprep.subr.mxu0 0.0
    %409 = vmatpush1.xpose.msra.mxu0 0.0
    %410 = vmatprep.subr.mxu0 0.0
    %411 = vmatpush1.xpose.msra.mxu0 0.0
    %412 = vmatprep.subr.mxu0 0.0
    %413 = vmatpush1.xpose.msra.mxu0 0.0
    %414 = vmatprep.subr.mxu0 0.0
    %415 = vmatpush1.xpose.msra.mxu0 0.0
    %416 = vmatprep.subr.mxu0 0.0
    %417 = vmatpush1.xpose.msra.mxu0 0.0
    %418 = vmatprep.subr.mxu0 0.0
    %419 = vmatpush1.xpose.msra.mxu0 0.0
    %420 = vmatprep.subr.mxu0 0.0
    %421 = vmatpush1.xpose.msra.mxu0 0.0
    %422 = vmatprep.subr.mxu0 0.0
    %423 = vmatpush1.xpose.msra.mxu0 0.0
    %424 = vmatprep.subr.mxu0 0.0
    %425 = vmatpush1.xpose.msra.mxu0 0.0
    %426 = vmatprep.mubr.f32.mxu0 0.0
    %427 = vmatmul.mubr.f32.gmra.mrb[0].mxu0 %v282
    %v428 = vpop.f32.mrb[0].mxu0
    %v429 = vadd.f32 %v227, %v428
    %v430 = vpop.f32.mrb[0].mxu0
    %431 = vmatprep.mubr.f32.mxu0 0.0
    %432 = vmatmul.mubr.f32.gmra.mrb[0].mxu0 %v285
    %v433 = vpop.f32.mrb[0].mxu0
    %v434 = vadd.f32 %v232, %v433
    %v435 = vpop.f32.mrb[0].mxu0
    %436 = vmatprep.mubr.f32.mxu0 0.0
    %437 = vmatmul.mubr.f32.gmra.mrb[0].mxu0 %v288
    %v438 = vpop.f32.mrb[0].mxu0
    %v439 = vadd.f32 %v237, %v438
    %v440 = vpop.f32.mrb[0].mxu0
    %441 = vmatprep.mubr.f32.mxu0 0.0
    %442 = vmatmul.mubr.f32.gmra.mrb[0].mxu0 %v291
    %v443 = vpop.f32.mrb[0].mxu0
    %v444 = vadd.f32 %v242, %v443
    %v445 = vpop.f32.mrb[0].mxu0
    %446 = vmatprep.mubr.f32.mxu0 0.0
    %447 = vmatmul.mubr.f32.gmra.mrb[0].mxu0 %v294
    %v448 = vpop.f32.mrb[0].mxu0
    %v449 = vadd.f32 %v247, %v448
    %v450 = vpop.f32.mrb[0].mxu0
    %451 = vmatprep.mubr.f32.mxu0 0.0
    %452 = vmatmul.mubr.f32.gmra.mrb[0].mxu0 %v297
    %v453 = vpop.f32.mrb[0].mxu0
    %v454 = vadd.f32 %v252, %v453
    %v455 = vpop.f32.mrb[0].mxu0
    %456 = vmatprep.mubr.f32.mxu0 0.0
    %457 = vmatmul.mubr.f32.gmra.mrb[0].mxu0 %v300
    %v458 = vpop.f32.mrb[0].mxu0
    %v459 = vadd.f32 %v257, %v458
    %v460 = vpop.f32.mrb[0].mxu0
    %461 = vmatprep.mubr.f32.mxu0 0.0
    %462 = vmatmul.mubr.f32.gmra.mrb[0].mxu0 %v303
    %v463 = vpop.f32.mrb[0].mxu0
    %v464 = vadd.f32 %v262, %v463
    %v465 = vpop.f32.mrb[0].mxu0
    %466 = vmatprep.mubr.f32.mxu0 0.0
    %467 = vmatmul.mubr.f32.gmra.mrb[0].mxu0 %v306
    %v468 = vpop.f32.mrb[0].mxu0
    %v469 = vadd.f32 %v267, %v468
    %v470 = vpop.f32.mrb[0].mxu0
    %471 = vmatprep.mubr.f32.mxu0 0.0
    %472 = vmatmul.mubr.f32.gmra.mrb[0].mxu0 %v309
    %v473 = vpop.f32.mrb[0].mxu0
    %v474 = vadd.f32 %v272, %v473
    %v475 = vpop.f32.mrb[0].mxu0
    %476 = vmatprep.mubr.f32.mxu0 0.0
    %477 = vmatmul.mubr.f32.gmra.mrb[0].mxu0 %v312
    %v478 = vpop.f32.mrb[0].mxu0
    %v479 = vadd.f32 %v277, %v478
    %v480 = vpop.f32.mrb[0].mxu0
    %481 = vdwg.mxu0
    %v482 = vld [vmem:[%s4] sm:$0xff]
    %v483 = vld [vmem:[%s4 + $0x8] sm:$0xff]
    %v484 = vld [vmem:[%s4 + $0x10] sm:$0xff]
    %v485 = vld [vmem:[%s4 + $0x18] sm:$0xff]
    %v486 = vld [vmem:[%s4 + $0x20] sm:$0xff]
    %v487 = vld [vmem:[%s4 + $0x28] sm:$0xff]
    %v488 = vld [vmem:[%s4 + $0x30] sm:$0xff]
    %v489 = vld [vmem:[%s4 + $0x38] sm:$0xff]
    %v490 = vld [vmem:[%s4 + $0x40] sm:$0xff]
    %v491 = vld [vmem:[%s4 + $0x48] sm:$0xff]
    %v492 = vld [vmem:[%s4 + $0x50] sm:$0xff]
    %494 = vset.pattern.permute.xlu0 0
    %495 = vperm.xlu0 %494, %v482
    %v496 = vpop.permute.xlu0 %495
    %499 = vset.pattern.permute.xlu0 0
    %500 = vperm.xlu0 %499, %v483
    %v501 = vpop.permute.xlu0 %500
    %504 = vset.pattern.permute.xlu0 0
    %505 = vperm.xlu0 %504, %v484
    %v506 = vpop.permute.xlu0 %505
    %509 = vset.pattern.permute.xlu0 0
    %510 = vperm.xlu0 %509, %v485
    %v511 = vpop.permute.xlu0 %510
    %514 = vset.pattern.permute.xlu0 0
    %515 = vperm.xlu0 %514, %v486
    %v516 = vpop.permute.xlu0 %515
    %519 = vset.pattern.permute.xlu0 0
    %520 = vperm.xlu0 %519, %v487
    %v521 = vpop.permute.xlu0 %520
    %524 = vset.pattern.permute.xlu0 0
    %525 = vperm.xlu0 %524, %v488
    %v526 = vpop.permute.xlu0 %525
    %529 = vset.pattern.permute.xlu0 0
    %530 = vperm.xlu0 %529, %v489
    %v531 = vpop.permute.xlu0 %530
    %534 = vset.pattern.permute.xlu0 0
    %535 = vperm.xlu0 %534, %v490
    %v536 = vpop.permute.xlu0 %535
    %539 = vset.pattern.permute.xlu0 0
    %540 = vperm.xlu0 %539, %v491
    %v541 = vpop.permute.xlu0 %540
    %544 = vset.pattern.permute.xlu0 0
    %545 = vperm.xlu0 %544, %v492
    %v546 = vpop.permute.xlu0 %545
    %v548 = vadd.f32 %v429, %v496
    %v549 = vadd.f32 %v434, %v501
    %v550 = vadd.f32 %v439, %v506
    %v551 = vadd.f32 %v444, %v511
    %v552 = vadd.f32 %v449, %v516
    %v553 = vadd.f32 %v454, %v521
    %v554 = vadd.f32 %v459, %v526
    %v555 = vadd.f32 %v464, %v531
    %v556 = vadd.f32 %v469, %v536
    %v557 = vadd.f32 %v474, %v541
    %v558 = vadd.f32 %v479, %v546
    %v559 = vmax.f32 %v548, 0.0
    %v560 = vmax.f32 %v549, 0.0
    %v561 = vmax.f32 %v550, 0.0
    %v562 = vmax.f32 %v551, 0.0
    %v563 = vmax.f32 %v552, 0.0
    %v564 = vmax.f32 %v553, 0.0
    %v565 = vmax.f32 %v554, 0.0
    %v566 = vmax.f32 %v555, 0.0
    %v567 = vmax.f32 %v556, 0.0
    %v568 = vmax.f32 %v557, 0.0
    %v569 = vmax.f32 %v558, 0.0
    %v570 = vld [vmem:[%s5] sm:$0xff]
    %v571 = vld [vmem:[%s5 + $0x8] sm:$0xff]
    %v572 = vld [vmem:[%s5 + $0x10] sm:$0xff]
    %v573 = vld [vmem:[%s5 + $0x18] sm:$0xff]
    %v574 = vld [vmem:[%s5 + $0x20] sm:$0xff]
    %v575 = vld [vmem:[%s5 + $0x28] sm:$0xff]
    %v576 = vld [vmem:[%s5 + $0x30] sm:$0xff]
    %v577 = vld [vmem:[%s5 + $0x38] sm:$0xff]
    %v578 = vld [vmem:[%s5 + $0x40] sm:$0xff]
    %v579 = vld [vmem:[%s5 + $0x48] sm:$0xff]
    %v580 = vld [vmem:[%s5 + $0x50] sm:$0xff]
    %582 = vset.pattern.permute.xlu0 0
    %583 = vperm.xlu0 %582, %v570
    %v584 = vpop.permute.xlu0 %583
    %587 = vset.pattern.permute.xlu0 0
    %588 = vperm.xlu0 %587, %v571
    %v589 = vpop.permute.xlu0 %588
    %592 = vset.pattern.permute.xlu0 0
    %593 = vperm.xlu0 %592, %v572
    %v594 = vpop.permute.xlu0 %593
    %597 = vset.pattern.permute.xlu0 0
    %598 = vperm.xlu0 %597, %v573
    %v599 = vpop.permute.xlu0 %598
    %602 = vset.pattern.permute.xlu0 0
    %603 = vperm.xlu0 %602, %v574
    %v604 = vpop.permute.xlu0 %603
    %607 = vset.pattern.permute.xlu0 0
    %608 = vperm.xlu0 %607, %v575
    %v609 = vpop.permute.xlu0 %608
    %612 = vset.pattern.permute.xlu0 0
    %613 = vperm.xlu0 %612, %v576
    %v614 = vpop.permute.xlu0 %613
    %617 = vset.pattern.permute.xlu0 0
    %618 = vperm.xlu0 %617, %v577
    %v619 = vpop.permute.xlu0 %618
    %622 = vset.pattern.permute.xlu0 0
    %623 = vperm.xlu0 %622, %v578
    %v624 = vpop.permute.xlu0 %623
    %627 = vset.pattern.permute.xlu0 0
    %628 = vperm.xlu0 %627, %v579
    %v629 = vpop.permute.xlu0 %628
    %632 = vset.pattern.permute.xlu0 0
    %633 = vperm.xlu0 %632, %v580
    %v634 = vpop.permute.xlu0 %633
    %v636 = vmul.f32 %v559, %v584
    %v637 = vmul.f32 %v560, %v589
    %v638 = vmul.f32 %v561, %v594
    %v639 = vmul.f32 %v562, %v599
    %v640 = vmul.f32 %v563, %v604
    %v641 = vmul.f32 %v564, %v609
    %v642 = vmul.f32 %v565, %v614
    %v643 = vmul.f32 %v566, %v619
    %v644 = vmul.f32 %v567, %v624
    %v645 = vmul.f32 %v568, %v629
    %v646 = vmul.f32 %v569, %v634
    %v647 = vadd.f32 %v636, %v637
    %v648 = vadd.f32 %v647, %v638
    %v649 = vadd.f32 %v648, %v639
    %v650 = vadd.f32 %v649, %v640
    %v651 = vadd.f32 %v650, %v641
    %v652 = vadd.f32 %v651, %v642
    %v653 = vadd.f32 %v652, %v643
    %v654 = vadd.f32 %v653, %v644
    %v655 = vadd.f32 %v654, %v645
    %v656 = vadd.f32 %v655, %v646
    %v657 = vrot.slane %v656, 4
    %v658 = vadd.f32 %v656, %v657
    %v659 = vrot.slane %v658, 2
    %v660 = vadd.f32 %v658, %v659
    %v661 = vrot.slane %v660, 1
    %v662 = vadd.f32 %v660, %v661
    %663 = vst [vmem:[#allocation2] sm:$0x1] %v662
    // Predicated region
    $region26: #{avg_ensemble_forward.1} parent=1 // pred_check
      _
    $region27: #{avg_ensemble_forward.1} parent=1 // pred_check_branch
      %665 = sbr.rel (0) target = $region29
    $region28: #{avg_ensemble_forward.1} parent=1 // pred_region
      %s667 = ssub.s32 16, 16
      %668 = vsyncadd [#allocation3], %s667
      %s670 = sshll.u32 [#allocation2], 4
      %s671 = int_to_ptr.vmem [resolvable:$true] %s670
      %673 = dma.vmem_to_hbm [thread:$0]  %s671, 16, %s6, [#allocation3]
    $region29: #{avg_ensemble_forward.1} parent=1 // pred_fallthru
      _
    // Predicated region
    $region30: #{avg_ensemble_forward.1} parent=1 // pred_check
      _
    $region31: #{avg_ensemble_forward.1} parent=1 // pred_check_branch
      %675 = sbr.rel (0) target = $region33
    $region32: #{avg_ensemble_forward.1} parent=1 // pred_region
      %676 = dma.done [#allocation3], 16
    $region33: #{avg_ensemble_forward.1} parent=1 // pred_fallthru
      _
    %677 = vsyncpa [#allocation3], 1

</llo_original>
